<compile_context>
chip_gen: v7x
topology: tpu7x:2x2x1
jax: 0.10.0
libtpu: 0.0.40
codegen_flags: <defaults>
</compile_context>

<pallas_src>
import jax
import jax.numpy as jnp
from jax.experimental import pallas as pl
from jax.experimental.pallas import tpu as pltpu

ALPHA = 2.0   # power of prediction (module default; strength-reduced to x*x)
GAMMA = 4.0   # power of target for negative samples (strength-reduced to (x*x)*(x*x))
EPS = 1e-12

LANES = 128
SUBLANE = 8
MAX_BLOCK_ROWS = 2048   # 2048 x 128 x 4B = 1 MiB f32 per array per tile


def _gaussian_focal_kernel(pred_ref, tgt_ref, out_ref):
    pred = pred_ref[...]
    tgt = tgt_ref[...]

    # pos_weights = (target == 1), neg_weights = (1 - target)^4
    pos_weights = (tgt == 1.0).astype(pred.dtype)
    one_minus_tgt = 1.0 - tgt
    omt_sq = one_minus_tgt * one_minus_tgt
    neg_weights = omt_sq * omt_sq

    one_minus_pred = 1.0 - pred
    # pos_loss = -log(pred + eps) * (1 - pred)^2 * pos_weights
    pos_loss = -jnp.log(pred + EPS) * (one_minus_pred * one_minus_pred) * pos_weights
    # neg_loss = -log(1 - pred + eps) * pred^2 * neg_weights
    neg_loss = -jnp.log(one_minus_pred + EPS) * (pred * pred) * neg_weights

    out_ref[...] = pos_loss + neg_loss


def gaussian_focal_loss(pred, target):
    """Elementwise Gaussian focal loss; returns a tensor of pred.shape."""
    assert pred.shape == target.shape
    orig_shape = pred.shape
    dtype = pred.dtype

    n = 1
    for s in orig_shape:
        n *= s

    # Choose the block: up to MAX_BLOCK_ROWS sublanes of 128 lanes, rounded to
    # a multiple of the (8, 128) hardware tile.
    rows_needed = -(-n // LANES)
    block_rows = min(MAX_BLOCK_ROWS, ((rows_needed + SUBLANE - 1) // SUBLANE) * SUBLANE)
    padded_rows = ((rows_needed + block_rows - 1) // block_rows) * block_rows
    n_pad = padded_rows * LANES

    pred_flat = pred.reshape(-1)
    tgt_flat = target.reshape(-1)
    if n_pad != n:
        # Single pad op per input; 0.5 keeps padded lanes away from log(0).
        pad = n_pad - n
        pred_flat = jnp.pad(pred_flat, (0, pad), constant_values=0.5)
        tgt_flat = jnp.pad(tgt_flat, (0, pad), constant_values=0.5)

    pred2d = pred_flat.reshape(padded_rows, LANES)
    tgt2d = tgt_flat.reshape(padded_rows, LANES)

    grid = (padded_rows // block_rows,)
    block = (block_rows, LANES)

    out2d = pl.pallas_call(
        _gaussian_focal_kernel,
        out_shape=jax.ShapeDtypeStruct((padded_rows, LANES), dtype),
        grid=grid,
        in_specs=[
            pl.BlockSpec(block, lambda i: (i, 0)),
            pl.BlockSpec(block, lambda i: (i, 0)),
        ],
        out_specs=pl.BlockSpec(block, lambda i: (i, 0)),
        compiler_params=pltpu.CompilerParams(
            dimension_semantics=("parallel",)
        ),
    )(pred2d, tgt2d)

    out = out2d.reshape(-1)
    if n_pad != n:
        out = out[:n]
    return out.reshape(orig_shape)


def _reference(pred, target):
    pos_weights = (target == 1.0).astype(pred.dtype)
    neg_weights = (1.0 - target) ** GAMMA
    pos_loss = -jnp.log(pred + EPS) * (1.0 - pred) ** ALPHA * pos_weights
    neg_loss = -jnp.log(1.0 - pred + EPS) * (pred ** ALPHA) * neg_weights
    return pos_loss + neg_loss


if __name__ == "__main__":
    key = jax.random.PRNGKey(0)
    k_pred, k_tgt = jax.random.split(key)

    # NCHW heatmaps: batch=2, channels=4, spatial=16x16
    shape = (2, 4, 16, 16)
    # Predictions are sigmoid outputs in (0, 1).
    pred = jax.nn.sigmoid(jax.random.normal(k_pred, shape, jnp.float32))
    # Target is a gaussian heatmap in [0, 1]; force a few exact-1 peaks so the
    # positive branch is exercised.
    target = jax.random.uniform(k_tgt, shape, jnp.float32)
    target = target.at[0, 0, 3, 5].set(1.0)
    target = target.at[1, 2, 10, 12].set(1.0)

    out = gaussian_focal_loss(pred, target)
    jax.block_until_ready(out)

    ref = _reference(pred, target)
    assert out.shape == shape
    assert jnp.allclose(out, ref, rtol=1e-5, atol=1e-5)

    print("KERNEL_OK")
</pallas_src>

<mosaic_0001>
module attributes {stable_mosaic.version = 11 : i64} {
  func.func @_gaussian_focal_kernel(%arg0: i32, %arg1: memref<16x128xf32, #tpu.memory_space<vmem>>, %arg2: memref<16x128xf32, #tpu.memory_space<vmem>>, %arg3: memref<16x128xf32, #tpu.memory_space<vmem>>) attributes {dimension_semantics = [#tpu.dimension_semantics<parallel>], iteration_bounds = array<i64: 1>, scalar_prefetch = 0 : i64, scratch_operands = 0 : i64, tpu.core_type = #tpu.core_type<tc>, window_params = [{transform_indices = @transform_0, window_bounds = array<i64: 16, 128>}, {transform_indices = @transform_1, window_bounds = array<i64: 16, 128>}, {transform_indices = @transform_2, window_bounds = array<i64: 16, 128>}]} {
    %c0 = arith.constant 0 : index
    %c0_0 = arith.constant 0 : index
    %0 = vector.load %arg1[%c0, %c0_0] : memref<16x128xf32, #tpu.memory_space<vmem>>, vector<16x128xf32>
    %c0_1 = arith.constant 0 : index
    %c0_2 = arith.constant 0 : index
    %1 = vector.load %arg2[%c0_1, %c0_2] : memref<16x128xf32, #tpu.memory_space<vmem>>, vector<16x128xf32>
    %cst = arith.constant 1.000000e+00 : f32
    %2 = vector.broadcast %cst : f32 to vector<16x128xf32>
    %3 = arith.cmpf oeq, %1, %2 : vector<16x128xf32>
    %4 = arith.extui %3 : vector<16x128xi1> to vector<16x128xi32>
    %5 = arith.sitofp %4 : vector<16x128xi32> to vector<16x128xf32>
    %cst_3 = arith.constant 1.000000e+00 : f32
    %6 = vector.broadcast %cst_3 : f32 to vector<16x128xf32>
    %7 = arith.subf %6, %1 : vector<16x128xf32>
    %8 = arith.mulf %7, %7 : vector<16x128xf32>
    %9 = arith.mulf %8, %8 : vector<16x128xf32>
    %cst_4 = arith.constant 1.000000e+00 : f32
    %10 = vector.broadcast %cst_4 : f32 to vector<16x128xf32>
    %11 = arith.subf %10, %0 : vector<16x128xf32>
    %cst_5 = arith.constant 9.99999996E-13 : f32
    %12 = vector.broadcast %cst_5 : f32 to vector<16x128xf32>
    %13 = arith.addf %0, %12 : vector<16x128xf32>
    %14 = math.log %13 : vector<16x128xf32>
    %cst_6 = arith.constant 0.000000e+00 : f32
    %15 = vector.broadcast %cst_6 : f32 to vector<16x128xf32>
    %16 = arith.subf %15, %14 : vector<16x128xf32>
    %17 = arith.mulf %11, %11 : vector<16x128xf32>
    %18 = arith.mulf %16, %17 : vector<16x128xf32>
    %19 = arith.mulf %18, %5 : vector<16x128xf32>
    %cst_7 = arith.constant 9.99999996E-13 : f32
    %20 = vector.broadcast %cst_7 : f32 to vector<16x128xf32>
    %21 = arith.addf %11, %20 : vector<16x128xf32>
    %22 = math.log %21 : vector<16x128xf32>
    %cst_8 = arith.constant 0.000000e+00 : f32
    %23 = vector.broadcast %cst_8 : f32 to vector<16x128xf32>
    %24 = arith.subf %23, %22 : vector<16x128xf32>
    %25 = arith.mulf %0, %0 : vector<16x128xf32>
    %26 = arith.mulf %24, %25 : vector<16x128xf32>
    %27 = arith.mulf %26, %9 : vector<16x128xf32>
    %28 = arith.addf %19, %27 : vector<16x128xf32>
    %c0_9 = arith.constant 0 : index
    %c0_10 = arith.constant 0 : index
    %29 = vector.load %arg3[%c0_9, %c0_10] : memref<16x128xf32, #tpu.memory_space<vmem>>, vector<16x128xf32>
    tpu.vector_store %arg3[%c0_9, %c0_10], %28 {strides = array<i32>} : memref<16x128xf32, #tpu.memory_space<vmem>>, vector<16x128xf32>,
    return
  }
  func.func @transform_0(%arg0: i32) -> (i32, i32) {
    %c0_i32 = arith.constant 0 : i32
    %c0_i32_0 = arith.constant 0 : i32
    return %arg0, %c0_i32 : i32, i32
  }
  func.func @transform_1(%arg0: i32) -> (i32, i32) {
    %c0_i32 = arith.constant 0 : i32
    %c0_i32_0 = arith.constant 0 : i32
    return %arg0, %c0_i32 : i32, i32
  }
  func.func @transform_2(%arg0: i32) -> (i32, i32) {
    %c0_i32 = arith.constant 0 : i32
    %c0_i32_0 = arith.constant 0 : i32
    return %arg0, %c0_i32 : i32, i32
  }
}

</mosaic_0001>

<llo_original>
// kernel: tpu_custom_call.1
$region0: #{tpu_custom_call.1}
  #allocation0 [shape = 'u32[]', space=smem, size = 0x4, offset = 0x4, fixed_abs, tag = 'smem constant byte address 0x4 - core index']
  #allocation1 [shape = 'u32[144,128]{1,0:T(1,128)}', space=vmem, size = 0x12000, scoped, tag = 'internal scratch']
  %s0 = inlined_call_operand.hbm [shape: f32[16,128], index: 0, kind: input, shape index: {}]
  %s1 = inlined_call_operand.hbm [shape: f32[16,128], index: 1, kind: input, shape index: {}]
  %s2 = inlined_call_operand.hbm [shape: f32[16,128], index: 2, kind: output, shape index: {}]
  %s3 = sld [smem:[#allocation0]]
  $region26: #{tpu_custom_call.1} parent=0
    _
  %s5 = ssub.s32 1, %s3
  %s6 = scalar_select 0, %s5, %s3
  $region1: #{tpu_custom_call.1} parent=0
    #allocation2 [shape = 'u8[8192]{0}', space=vmem, size = 0x2000, scoped, tag = 'input window, operand 0, single buffered']
    #allocation3 [shape = 's32[1]{0}', space=sflag, size = 0x4, scoped, tag = 'scoped memory for tpu_custom_call.1']
    #allocation4 [shape = 's32[1]{0}', space=sflag, size = 0x4, scoped, tag = 'scoped memory for tpu_custom_call.1']
    #allocation5 [shape = 'u8[8192]{0}', space=vmem, size = 0x2000, scoped, tag = 'input window, operand 1, single buffered']
    #allocation6 [shape = 's32[1]{0}', space=sflag, size = 0x4, scoped, tag = 'scoped memory for tpu_custom_call.1']
    #allocation7 [shape = 'u8[8192]{0}', space=vmem, size = 0x2000, scoped, tag = 'output window, operand 0, single buffered']
    %7 = vsyncpa [#allocation3], 0
    %8 = vsyncpa [#allocation6], 0
    %9 = vsyncpa [#allocation4], 0
    // Predicated region
    $region2: #{tpu_custom_call.1} parent=1 // pred_check
      _
    $region3: #{tpu_custom_call.1} parent=1 // pred_check_branch
      %11 = sbr.rel (0) target = $region5
    $region4: #{tpu_custom_call.1} parent=1 // pred_region
      %s13 = ssub.s32 256, 256
      %14 = vsyncadd [#allocation3], %s13
      %s15 = sshll.u32 [#allocation2], 4
      %s16 = int_to_ptr.vmem [resolvable:$true] %s15
      %21 = dma.hbm_to_vmem [thread:$0]  %s0, 256, %s16, [#allocation3], 128, 128, 8
    $region5: #{tpu_custom_call.1} parent=1 // pred_fallthru
      _
    // Predicated region
    $region6: #{tpu_custom_call.1} parent=1 // pred_check
      _
    $region7: #{tpu_custom_call.1} parent=1 // pred_check_branch
      %23 = sbr.rel (0) target = $region9
    $region8: #{tpu_custom_call.1} parent=1 // pred_region
      %s25 = ssub.s32 256, 256
      %26 = vsyncadd [#allocation6], %s25
      %s27 = sshll.u32 [#allocation5], 4
      %s28 = int_to_ptr.vmem [resolvable:$true] %s27
      %33 = dma.hbm_to_vmem [thread:$0]  %s1, 256, %s28, [#allocation6], 128, 128, 8
    $region9: #{tpu_custom_call.1} parent=1 // pred_fallthru
      _
    // Predicated region
    $region10: #{tpu_custom_call.1} parent=1 // pred_check
      _
    $region11: #{tpu_custom_call.1} parent=1 // pred_check_branch
      %35 = sbr.rel (0) target = $region13
    $region12: #{tpu_custom_call.1} parent=1 // pred_region
      %36 = dma.done [#allocation3], 256
    $region13: #{tpu_custom_call.1} parent=1 // pred_fallthru
      _
    // Predicated region
    $region14: #{tpu_custom_call.1} parent=1 // pred_check
      _
    $region15: #{tpu_custom_call.1} parent=1 // pred_check_branch
      %38 = sbr.rel (0) target = $region17
    $region16: #{tpu_custom_call.1} parent=1 // pred_region
      %39 = dma.done [#allocation6], 256
    $region17: #{tpu_custom_call.1} parent=1 // pred_fallthru
      _
    %v40 = vld [vmem:[#allocation2] sm:$0xff]
    %v41 = vld [vmem:[#allocation2 + $0x8] sm:$0xff]
    %v42 = vld [vmem:[#allocation5] sm:$0xff]
    %v43 = vld [vmem:[#allocation5 + $0x8] sm:$0xff]
    %vm44 = vcmp.eq.f32.partialorder %v42, 1.0
    %vm45 = vcmp.eq.f32.partialorder %v43, 1.0
    %v46 = vsel %vm44, 1, 0
    %v47 = vsel %vm45, 1, 0
    %v48 = vcvt.s32.f32 %v46
    %v49 = vcvt.s32.f32 %v47
    %v50 = vsub.f32 1.0, %v42
    %v51 = vsub.f32 1.0, %v43
    %v52 = vmul.f32 %v50, %v50
    %v53 = vmul.f32 %v51, %v51
    %v54 = vmul.f32 %v52, %v52
    %v55 = vmul.f32 %v53, %v53
    %v56 = vsub.f32 1.0, %v40
    %v57 = vsub.f32 1.0, %v41
    %v58 = vadd.f32 %v40, 1e-12
    %v59 = vadd.f32 %v41, 1e-12
    %v60 = vlog2.pop %v58
    %v61 = vmul.f32 %v60, 0.6931472
    %v62 = vlog2.pop %v59
    %v63 = vmul.f32 %v62, 0.6931472
    %v64 = vsub.f32 0.0, %v61
    %v65 = vsub.f32 0.0, %v63
    %v66 = vmul.f32 %v56, %v56
    %v67 = vmul.f32 %v57, %v57
    %v68 = vmul.f32 %v64, %v66
    %v69 = vmul.f32 %v65, %v67
    %v70 = vmul.f32 %v68, %v48
    %v71 = vmul.f32 %v69, %v49
    %v72 = vadd.f32 %v56, 1e-12
    %v73 = vadd.f32 %v57, 1e-12
    %v74 = vlog2.pop %v72
    %v75 = vmul.f32 %v74, 0.6931472
    %v76 = vlog2.pop %v73
    %v77 = vmul.f32 %v76, 0.6931472
    %v78 = vsub.f32 0.0, %v75
    %v79 = vsub.f32 0.0, %v77
    %v80 = vmul.f32 %v40, %v40
    %v81 = vmul.f32 %v41, %v41
    %v82 = vmul.f32 %v78, %v80
    %v83 = vmul.f32 %v79, %v81
    %v84 = vmul.f32 %v82, %v54
    %v85 = vmul.f32 %v83, %v55
    %v86 = vadd.f32 %v70, %v84
    %v87 = vadd.f32 %v71, %v85
    %88 = vst [vmem:[#allocation7] sm:$0xff] %v86
    %89 = vst [vmem:[#allocation7 + $0x8] sm:$0xff] %v87
    // Predicated region
    $region18: #{tpu_custom_call.1} parent=1 // pred_check
      _
    $region19: #{tpu_custom_call.1} parent=1 // pred_check_branch
      %91 = sbr.rel (0) target = $region21
    $region20: #{tpu_custom_call.1} parent=1 // pred_region
      %s93 = ssub.s32 256, 256
      %94 = vsyncadd [#allocation4], %s93
      %s95 = sshll.u32 [#allocation7], 4
      %s96 = int_to_ptr.vmem [resolvable:$true] %s95
      %101 = dma.vmem_to_hbm [thread:$0]  %s96, 256, %s2, [#allocation4], 128, 128, 8
    $region21: #{tpu_custom_call.1} parent=1 // pred_fallthru
      _
    // Predicated region
    $region22: #{tpu_custom_call.1} parent=1 // pred_check
      _
    $region23: #{tpu_custom_call.1} parent=1 // pred_check_branch
      %103 = sbr.rel (0) target = $region25
    $region24: #{tpu_custom_call.1} parent=1 // pred_region
      %104 = dma.done [#allocation4], 256
    $region25: #{tpu_custom_call.1} parent=1 // pred_fallthru
      _
    %105 = vsyncpa [#allocation3], 1
    %106 = vsyncpa [#allocation6], 1
    %107 = vsyncpa [#allocation4], 1

</llo_original>
